<compile_context>
chip_gen: v6e
topology: v6e:2x2x1
jax: 0.10.0
libtpu: 0.0.40
codegen_flags: <defaults>
</compile_context>

<pallas_src>
import jax
import jax.numpy as jnp
from jax import lax
from jax.experimental import pallas as pl
from jax.experimental.pallas import tpu as pltpu


# -----------------------------------------------------------------------------
# Fused kernel: (conv3x3 + BN + ReLU + Dropout[eval]) x 2 for B batch images.
# -----------------------------------------------------------------------------
def _decoder_block_kernel(x_ref, t1_ref, t2_ref, bias_ref, o_ref, xp1, xp2):
    """Packed-row layout: one image row is a single lane vector of length W*C.

    x_ref:    (B, H, W*Cin)        input images, channels folded into lanes
    t1_ref:   (3, W*Cin, W*Cmid)   width-Toeplitz conv1 weights (BN1 scale folded)
    t2_ref:   (3, W*Cmid, W*Cout)  width-Toeplitz conv2 weights (BN2 scale folded)
    bias_ref: (2, W*Cout)          rows: bias1, bias2 (conv bias + BN folded, tiled)
    o_ref:    (B, H, W*Cout)       output images (lane-dense: W*Cout mult. of 128)
    xp1:      VMEM (B, H+2, W*Cin)  layer-1 input with per-image vertical zero halo
    xp2:      VMEM (B, H+2, W*Cmid) layer-1 output with per-image vertical zero halo
    """
    B = o_ref.shape[0]
    H = o_ref.shape[1]
    cdt = xp1.dtype  # compute dtype of the matmul LHS / weights (f32 or bf16)

    def conv_rows(xp, t_ref):
        """3 MXU matmuls (one per kernel row dy) with M = B*H rows."""
        k = xp.shape[2]
        # Seed the accumulator with the dy=0 product (no zero-fill + add).
        acc = jnp.dot(xp[:, 0:H, :].reshape(B * H, k), t_ref[0],
                      preferred_element_type=jnp.float32)
        for dy in (1, 2):
            acc = acc + jnp.dot(xp[:, dy:dy + H, :].reshape(B * H, k), t_ref[dy],
                                preferred_element_type=jnp.float32)
        return acc

    # ---- layer 1: conv1 -> bn1 -> relu1 -> dropout1 (identity in eval) ----
    z1 = jnp.zeros((B, 1, xp1.shape[2]), cdt)
    xp1[:, 0:1, :] = z1                       # per-image top halo rows
    xp1[:, H + 1:H + 2, :] = z1               # per-image bottom halo rows
    xp1[:, 1:H + 1, :] = x_ref[...].astype(cdt)

    y1 = jnp.maximum(conv_rows(xp1, t1_ref) + bias_ref[0:1, :], 0.0)

    # ---- layer 2: conv2 -> bn2 -> relu2 -> dropout2 (identity in eval) ----
    z2 = jnp.zeros((B, 1, xp2.shape[2]), cdt)
    xp2[:, 0:1, :] = z2
    xp2[:, H + 1:H + 2, :] = z2
    xp2[:, 1:H + 1, :] = y1.reshape(B, H, xp2.shape[2]).astype(cdt)  # stays in VMEM

    y2 = jnp.maximum(conv_rows(xp2, t2_ref) + bias_ref[1:2, :], 0.0)

    o_ref[...] = y2.reshape(B, H, o_ref.shape[2]).astype(o_ref.dtype)  # 128-lane vst


# -----------------------------------------------------------------------------
# One-time weight preparation (outside the per-step hot path).
# -----------------------------------------------------------------------------
def _toeplitz_weights(w_hwio, width):
    """(3,3,Cin,Cout) conv weights -> (3, width*Cin, width*Cout) lowered weights.

    T[dy][(w+dx-1)*Cin + ci, w*Cout + co] = w_hwio[dy, dx, ci, co]; out-of-range
    rows (the horizontal 'same' zero padding) are simply dropped.
    """
    kh, kw, cin, cout = w_hwio.shape
    mats = []
    for dy in range(kh):
        t = jnp.zeros((width * cin, width * cout), w_hwio.dtype)
        for dx in range(kw):
            band = jnp.eye(width, k=1 - dx, dtype=w_hwio.dtype)
            t = t + jnp.kron(band, w_hwio[dy, dx])
        mats.append(t)
    return jnp.stack(mats)


def _fold_bn(conv_bias, gamma, beta, running_mean, running_var, eps=1e-5):
    inv_std = 1.0 / jnp.sqrt(running_var + eps)
    scale = gamma * inv_std
    bias = beta + scale * (conv_bias - running_mean)
    return scale, bias


def prepare_decoder_params(params, width, compute_dtype=jnp.float32):
    """Build Toeplitz conv weights (BN scale folded in) + tiled bias. Call once.

    compute_dtype=jnp.bfloat16 is the recommended production setting (bf16-native
    MXU on v6e/v7x, half the weight DMA/VMEM); the f32 default keeps strict
    parity with an f32 reference.
    """
    s1, b1 = _fold_bn(params["b1"], params["gamma1"], params["beta1"],
                      params["mean1"], params["var1"])
    s2, b2 = _fold_bn(params["b2"], params["gamma2"], params["beta2"],
                      params["mean2"], params["var2"])
    # Fold the BN scale into the conv weights (per output channel).
    w1s = params["w1"] * s1[None, None, None, :]
    w2s = params["w2"] * s2[None, None, None, :]
    t1 = _toeplitz_weights(w1s, width).astype(compute_dtype)
    t2 = _toeplitz_weights(w2s, width).astype(compute_dtype)
    # Cmid == Cout for this module (conv1: in->out, conv2: out->out), so both
    # tiled bias rows have the same packed width W*Cout.
    bias = jnp.stack([jnp.tile(b1, width), jnp.tile(b2, width)]).astype(jnp.float32)
    return {"t1": t1, "t2": t2, "bias": bias}


def _pick_batch_tile(n, h, target_rows=256):
    """Largest divisor B of n with B*h <= target_rows (fills the MXU M-dim)."""
    best = 1
    for d in range(1, n + 1):
        if n % d == 0 and d * h <= max(target_rows, h):
            best = d
    return best


# -----------------------------------------------------------------------------
# Forward wrappers.
# -----------------------------------------------------------------------------
def decoder_block_forward_nhwc(x_nhwc, prepared, batch_tile=None):
    """NHWC-native fused forward (preferred path: no layout transposes)."""
    N, H, W, Cin = x_nhwc.shape
    t1, t2, bias = prepared["t1"], prepared["t2"], prepared["bias"]
    Cmid = t1.shape[2] // W
    Cout = t2.shape[2] // W
    cdt = t1.dtype

    B = batch_tile if batch_tile is not None else _pick_batch_tile(N, H)
    assert N % B == 0, "batch tile must divide the batch size"

    x_packed = x_nhwc.reshape(N, H, W * Cin)   # free: row-major dim merge

    out_packed = pl.pallas_call(
        _decoder_block_kernel,
        out_shape=jax.ShapeDtypeStruct((N, H, W * Cout), jnp.float32),
        grid_spec=pltpu.PrefetchScalarGridSpec(
            num_scalar_prefetch=0,
            grid=(N // B,),
            in_specs=[
                pl.BlockSpec((B, H, W * Cin), lambda b: (b, 0, 0)),
                # Weight / bias operands are grid-invariant (constant index_map);
                # at these sizes default double-buffering costs <600 KB of VMEM.
                # (pipeline_mode=pl.Buffered(1) would halve that on v7x.)
                pl.BlockSpec((3, W * Cin, W * Cmid), lambda b: (0, 0, 0)),
                pl.BlockSpec((3, W * Cmid, W * Cout), lambda b: (0, 0, 0)),
                pl.BlockSpec((2, W * Cout), lambda b: (0, 0)),
            ],
            out_specs=pl.BlockSpec((B, H, W * Cout), lambda b: (b, 0, 0)),
            scratch_shapes=[
                pltpu.VMEM((B, H + 2, W * Cin), cdt),    # conv1 input + H halos
                pltpu.VMEM((B, H + 2, W * Cmid), cdt),   # conv1 output + H halos
            ],
        ),
        compiler_params=pltpu.CompilerParams(
            dimension_semantics=("parallel",)),  # batch shards over v7x's 2 TCs
    )(x_packed, t1, t2, bias)

    return out_packed.reshape(N, H, W, Cout)    # free: row-major dim split


@jax.jit
def decoder_block_forward(x_nchw, prepared):
    """PyTorch-convention adapter (NCHW in / NCHW out).

    The two transposes are full HBM passes; production code should keep the
    model NHWC end-to-end and call decoder_block_forward_nhwc directly.
    """
    x = jnp.transpose(x_nchw, (0, 2, 3, 1))
    y = decoder_block_forward_nhwc(x, prepared)
    return jnp.transpose(y, (0, 3, 1, 2))


# -----------------------------------------------------------------------------
# Parameter init + pure-JAX reference (for the correctness check).
# -----------------------------------------------------------------------------
def init_decoder_block_params(key, in_channels, out_channels):
    ks = jax.random.split(key, 10)

    def conv_w(k, cin, cout):
        bound = 1.0 / jnp.sqrt(cin * 9)
        return jax.random.uniform(k, (3, 3, cin, cout), jnp.float32, -bound, bound)

    def conv_b(k, cin, cout):
        bound = 1.0 / jnp.sqrt(cin * 9)
        return jax.random.uniform(k, (cout,), jnp.float32, -bound, bound)

    return dict(
        w1=conv_w(ks[0], in_channels, out_channels),
        b1=conv_b(ks[1], in_channels, out_channels),
        gamma1=1.0 + 0.1 * jax.random.normal(ks[2], (out_channels,), jnp.float32),
        beta1=0.1 * jax.random.normal(ks[3], (out_channels,), jnp.float32),
        mean1=0.1 * jax.random.normal(ks[4], (out_channels,), jnp.float32),
        var1=jnp.abs(1.0 + 0.1 * jax.random.normal(ks[5], (out_channels,), jnp.float32)),
        w2=conv_w(ks[6], out_channels, out_channels),
        b2=conv_b(ks[7], out_channels, out_channels),
        gamma2=1.0 + 0.1 * jax.random.normal(ks[8], (out_channels,), jnp.float32),
        beta2=0.1 * jax.random.normal(ks[9], (out_channels,), jnp.float32),
        mean2=jnp.zeros((out_channels,), jnp.float32),
        var2=jnp.ones((out_channels,), jnp.float32),
    )


def _reference_forward(x_nchw, params):
    """Pure-JAX reference (lax.conv) matching PyTorch eval-mode semantics."""
    def block(x, w, b, g, beta, mean, var):
        y = lax.conv_general_dilated(
            jnp.transpose(x, (0, 2, 3, 1)), w,
            window_strides=(1, 1), padding="SAME",
            dimension_numbers=("NHWC", "HWIO", "NHWC"))
        y = y + b
        y = (y - mean) / jnp.sqrt(var + 1e-5) * g + beta
        y = jnp.maximum(y, 0.0)
        return jnp.transpose(y, (0, 3, 1, 2))

    x = block(x_nchw, params["w1"], params["b1"], params["gamma1"],
              params["beta1"], params["mean1"], params["var1"])
    x = block(x, params["w2"], params["b2"], params["gamma2"],
              params["beta2"], params["mean2"], params["var2"])
    return x


if __name__ == "__main__":
    key = jax.random.PRNGKey(0)
    k_x, k_p = jax.random.split(key)

    N, Cin, Cout, H, W = 2, 4, 8, 16, 16
    x = jax.random.normal(k_x, (N, Cin, H, W), jnp.float32)
    params = init_decoder_block_params(k_p, Cin, Cout)

    # One-time weight transform. f32 here for the 1e-4 parity check; pass
    # compute_dtype=jnp.bfloat16 for the faster production configuration.
    prepared = prepare_decoder_params(params, W, jnp.float32)
    prepared = jax.tree_util.tree_map(jax.block_until_ready, prepared)

    out = jax.block_until_ready(decoder_block_forward(x, prepared))
    ref = jax.block_until_ready(_reference_forward(x, params))

    assert out.shape == (N, Cout, H, W)
    assert jnp.allclose(out, ref, atol=1e-4, rtol=1e-4), "mismatch vs reference"

    print("KERNEL_OK")
</pallas_src>

<mosaic_0001>
module attributes {stable_mosaic.version = 11 : i64} {
  func.func @_decoder_block_kernel(%arg0: i32, %arg1: memref<2x16x64xf32, #tpu.memory_space<vmem>>, %arg2: memref<3x64x128xf32, #tpu.memory_space<vmem>>, %arg3: memref<3x128x128xf32, #tpu.memory_space<vmem>>, %arg4: memref<2x128xf32, #tpu.memory_space<vmem>>, %arg5: memref<2x16x128xf32, #tpu.memory_space<vmem>>, %arg6: memref<2x18x64xf32, #tpu.memory_space<vmem>>, %arg7: memref<2x18x128xf32, #tpu.memory_space<vmem>>) attributes {dimension_semantics = [#tpu.dimension_semantics<parallel>], iteration_bounds = array<i64: 1>, scalar_prefetch = 0 : i64, scratch_operands = 2 : i64, tpu.core_type = #tpu.core_type<tc>, window_params = [{transform_indices = @transform_0, window_bounds = array<i64: 2, 16, 64>}, {pipeline_mode = #tpu.pipeline_mode<synchronous>, transform_indices = @transform_1, window_bounds = array<i64: 3, 64, 128>}, {pipeline_mode = #tpu.pipeline_mode<synchronous>, transform_indices = @transform_2, window_bounds = array<i64: 3, 128, 128>}, {pipeline_mode = #tpu.pipeline_mode<synchronous>, transform_indices = @transform_3, window_bounds = array<i64: 2, 128>}, {transform_indices = @transform_4, window_bounds = array<i64: 2, 16, 128>}]} {
    %cst = arith.constant 0.000000e+00 : f32
    %0 = vector.broadcast %cst : f32 to vector<2x1x64xf32>
    %c0 = arith.constant 0 : index
    %c0_0 = arith.constant 0 : index
    %c0_1 = arith.constant 0 : index
    %1 = vector.load %arg6[%c0, %c0_0, %c0_1] : memref<2x18x64xf32, #tpu.memory_space<vmem>>, vector<2x1x64xf32>
    tpu.vector_store %arg6[%c0, %c0_0, %c0_1], %0 {strides = array<i32>} : memref<2x18x64xf32, #tpu.memory_space<vmem>>, vector<2x1x64xf32>,
    %c0_2 = arith.constant 0 : index
    %c17 = arith.constant 17 : index
    %c0_3 = arith.constant 0 : index
    %2 = vector.load %arg6[%c0_2, %c17, %c0_3] : memref<2x18x64xf32, #tpu.memory_space<vmem>>, vector<2x1x64xf32>
    tpu.vector_store %arg6[%c0_2, %c17, %c0_3], %0 {strides = array<i32>} : memref<2x18x64xf32, #tpu.memory_space<vmem>>, vector<2x1x64xf32>,
    %c0_4 = arith.constant 0 : index
    %c0_5 = arith.constant 0 : index
    %c0_6 = arith.constant 0 : index
    %3 = vector.load %arg1[%c0_4, %c0_5, %c0_6] : memref<2x16x64xf32, #tpu.memory_space<vmem>>, vector<2x16x64xf32>
    %c0_7 = arith.constant 0 : index
    %c1 = arith.constant 1 : index
    %c0_8 = arith.constant 0 : index
    %4 = vector.load %arg6[%c0_7, %c1, %c0_8] : memref<2x18x64xf32, #tpu.memory_space<vmem>>, vector<2x16x64xf32>
    tpu.vector_store %arg6[%c0_7, %c1, %c0_8], %3 {strides = array<i32>} : memref<2x18x64xf32, #tpu.memory_space<vmem>>, vector<2x16x64xf32>,
    %c0_9 = arith.constant 0 : index
    %c0_10 = arith.constant 0 : index
    %c0_11 = arith.constant 0 : index
    %5 = vector.load %arg6[%c0_9, %c0_10, %c0_11] : memref<2x18x64xf32, #tpu.memory_space<vmem>>, vector<2x16x64xf32>
    %6 = vector.shape_cast %5 : vector<2x16x64xf32> to vector<32x64xf32>
    %c0_12 = arith.constant 0 : index
    %c0_13 = arith.constant 0 : index
    %c0_14 = arith.constant 0 : index
    %7 = vector.load %arg2[%c0_12, %c0_13, %c0_14] : memref<3x64x128xf32, #tpu.memory_space<vmem>>, vector<1x64x128xf32>
    %8 = vector.shape_cast %7 : vector<1x64x128xf32> to vector<64x128xf32>
    %cst_15 = arith.constant dense<0.000000e+00> : vector<32x128xf32>
    %9 = tpu.matmul %6, %8, %cst_15 {dimension_numbers = #tpu.dot_dimension_numbers<[1], [0], [0], [1], [0, 0, 1, 1], [], []>} : vector<32x64xf32>, vector<64x128xf32>, vector<32x128xf32> -> vector<32x128xf32>
    %c0_16 = arith.constant 0 : index
    %c1_17 = arith.constant 1 : index
    %c0_18 = arith.constant 0 : index
    %10 = vector.load %arg6[%c0_16, %c1_17, %c0_18] : memref<2x18x64xf32, #tpu.memory_space<vmem>>, vector<2x16x64xf32>
    %11 = vector.shape_cast %10 : vector<2x16x64xf32> to vector<32x64xf32>
    %c1_19 = arith.constant 1 : index
    %c0_20 = arith.constant 0 : index
    %c0_21 = arith.constant 0 : index
    %12 = vector.load %arg2[%c1_19, %c0_20, %c0_21] : memref<3x64x128xf32, #tpu.memory_space<vmem>>, vector<1x64x128xf32>
    %13 = vector.shape_cast %12 : vector<1x64x128xf32> to vector<64x128xf32>
    %cst_22 = arith.constant dense<0.000000e+00> : vector<32x128xf32>
    %14 = tpu.matmul %11, %13, %cst_22 {dimension_numbers = #tpu.dot_dimension_numbers<[1], [0], [0], [1], [0, 0, 1, 1], [], []>} : vector<32x64xf32>, vector<64x128xf32>, vector<32x128xf32> -> vector<32x128xf32>
    %15 = arith.addf %9, %14 : vector<32x128xf32>
    %c0_23 = arith.constant 0 : index
    %c2 = arith.constant 2 : index
    %c0_24 = arith.constant 0 : index
    %16 = vector.load %arg6[%c0_23, %c2, %c0_24] : memref<2x18x64xf32, #tpu.memory_space<vmem>>, vector<2x16x64xf32>
    %17 = vector.shape_cast %16 : vector<2x16x64xf32> to vector<32x64xf32>
    %c2_25 = arith.constant 2 : index
    %c0_26 = arith.constant 0 : index
    %c0_27 = arith.constant 0 : index
    %18 = vector.load %arg2[%c2_25, %c0_26, %c0_27] : memref<3x64x128xf32, #tpu.memory_space<vmem>>, vector<1x64x128xf32>
    %19 = vector.shape_cast %18 : vector<1x64x128xf32> to vector<64x128xf32>
    %cst_28 = arith.constant dense<0.000000e+00> : vector<32x128xf32>
    %20 = tpu.matmul %17, %19, %cst_28 {dimension_numbers = #tpu.dot_dimension_numbers<[1], [0], [0], [1], [0, 0, 1, 1], [], []>} : vector<32x64xf32>, vector<64x128xf32>, vector<32x128xf32> -> vector<32x128xf32>
    %21 = arith.addf %15, %20 : vector<32x128xf32>
    %c0_29 = arith.constant 0 : index
    %c0_30 = arith.constant 0 : index
    %22 = vector.load %arg4[%c0_29, %c0_30] : memref<2x128xf32, #tpu.memory_space<vmem>>, vector<1x128xf32>
    %23 = vector.broadcast %22 : vector<1x128xf32> to vector<32x128xf32>
    %24 = arith.addf %21, %23 : vector<32x128xf32>
    %cst_31 = arith.constant 0.000000e+00 : f32
    %25 = vector.broadcast %cst_31 : f32 to vector<32x128xf32>
    %26 = arith.maximumf %24, %25 : vector<32x128xf32>
    %cst_32 = arith.constant 0.000000e+00 : f32
    %27 = vector.broadcast %cst_32 : f32 to vector<2x1x128xf32>
    %c0_33 = arith.constant 0 : index
    %c0_34 = arith.constant 0 : index
    %c0_35 = arith.constant 0 : index
    %28 = vector.load %arg7[%c0_33, %c0_34, %c0_35] : memref<2x18x128xf32, #tpu.memory_space<vmem>>, vector<2x1x128xf32>
    tpu.vector_store %arg7[%c0_33, %c0_34, %c0_35], %27 {strides = array<i32>} : memref<2x18x128xf32, #tpu.memory_space<vmem>>, vector<2x1x128xf32>,
    %c0_36 = arith.constant 0 : index
    %c17_37 = arith.constant 17 : index
    %c0_38 = arith.constant 0 : index
    %29 = vector.load %arg7[%c0_36, %c17_37, %c0_38] : memref<2x18x128xf32, #tpu.memory_space<vmem>>, vector<2x1x128xf32>
    tpu.vector_store %arg7[%c0_36, %c17_37, %c0_38], %27 {strides = array<i32>} : memref<2x18x128xf32, #tpu.memory_space<vmem>>, vector<2x1x128xf32>,
    %30 = vector.shape_cast %26 : vector<32x128xf32> to vector<2x16x128xf32>
    %c0_39 = arith.constant 0 : index
    %c1_40 = arith.constant 1 : index
    %c0_41 = arith.constant 0 : index
    %31 = vector.load %arg7[%c0_39, %c1_40, %c0_41] : memref<2x18x128xf32, #tpu.memory_space<vmem>>, vector<2x16x128xf32>
    tpu.vector_store %arg7[%c0_39, %c1_40, %c0_41], %30 {strides = array<i32>} : memref<2x18x128xf32, #tpu.memory_space<vmem>>, vector<2x16x128xf32>,
    %c0_42 = arith.constant 0 : index
    %c0_43 = arith.constant 0 : index
    %c0_44 = arith.constant 0 : index
    %32 = vector.load %arg7[%c0_42, %c0_43, %c0_44] : memref<2x18x128xf32, #tpu.memory_space<vmem>>, vector<2x16x128xf32>
    %33 = vector.shape_cast %32 : vector<2x16x128xf32> to vector<32x128xf32>
    %c0_45 = arith.constant 0 : index
    %c0_46 = arith.constant 0 : index
    %c0_47 = arith.constant 0 : index
    %34 = vector.load %arg3[%c0_45, %c0_46, %c0_47] : memref<3x128x128xf32, #tpu.memory_space<vmem>>, vector<1x128x128xf32>
    %35 = vector.shape_cast %34 : vector<1x128x128xf32> to vector<128x128xf32>
    %cst_48 = arith.constant dense<0.000000e+00> : vector<32x128xf32>
    %36 = tpu.matmul %33, %35, %cst_48 {dimension_numbers = #tpu.dot_dimension_numbers<[1], [0], [0], [1], [0, 0, 1, 1], [], []>} : vector<32x128xf32>, vector<128x128xf32>, vector<32x128xf32> -> vector<32x128xf32>
    %c0_49 = arith.constant 0 : index
    %c1_50 = arith.constant 1 : index
    %c0_51 = arith.constant 0 : index
    %37 = vector.load %arg7[%c0_49, %c1_50, %c0_51] : memref<2x18x128xf32, #tpu.memory_space<vmem>>, vector<2x16x128xf32>
    %38 = vector.shape_cast %37 : vector<2x16x128xf32> to vector<32x128xf32>
    %c1_52 = arith.constant 1 : index
    %c0_53 = arith.constant 0 : index
    %c0_54 = arith.constant 0 : index
    %39 = vector.load %arg3[%c1_52, %c0_53, %c0_54] : memref<3x128x128xf32, #tpu.memory_space<vmem>>, vector<1x128x128xf32>
    %40 = vector.shape_cast %39 : vector<1x128x128xf32> to vector<128x128xf32>
    %cst_55 = arith.constant dense<0.000000e+00> : vector<32x128xf32>
    %41 = tpu.matmul %38, %40, %cst_55 {dimension_numbers = #tpu.dot_dimension_numbers<[1], [0], [0], [1], [0, 0, 1, 1], [], []>} : vector<32x128xf32>, vector<128x128xf32>, vector<32x128xf32> -> vector<32x128xf32>
    %42 = arith.addf %36, %41 : vector<32x128xf32>
    %c0_56 = arith.constant 0 : index
    %c2_57 = arith.constant 2 : index
    %c0_58 = arith.constant 0 : index
    %43 = vector.load %arg7[%c0_56, %c2_57, %c0_58] : memref<2x18x128xf32, #tpu.memory_space<vmem>>, vector<2x16x128xf32>
    %44 = vector.shape_cast %43 : vector<2x16x128xf32> to vector<32x128xf32>
    %c2_59 = arith.constant 2 : index
    %c0_60 = arith.constant 0 : index
    %c0_61 = arith.constant 0 : index
    %45 = vector.load %arg3[%c2_59, %c0_60, %c0_61] : memref<3x128x128xf32, #tpu.memory_space<vmem>>, vector<1x128x128xf32>
    %46 = vector.shape_cast %45 : vector<1x128x128xf32> to vector<128x128xf32>
    %cst_62 = arith.constant dense<0.000000e+00> : vector<32x128xf32>
    %47 = tpu.matmul %44, %46, %cst_62 {dimension_numbers = #tpu.dot_dimension_numbers<[1], [0], [0], [1], [0, 0, 1, 1], [], []>} : vector<32x128xf32>, vector<128x128xf32>, vector<32x128xf32> -> vector<32x128xf32>
    %48 = arith.addf %42, %47 : vector<32x128xf32>
    %c1_63 = arith.constant 1 : index
    %c0_64 = arith.constant 0 : index
    %49 = vector.load %arg4[%c1_63, %c0_64] : memref<2x128xf32, #tpu.memory_space<vmem>>, vector<1x128xf32>
    %50 = vector.broadcast %49 : vector<1x128xf32> to vector<32x128xf32>
    %51 = arith.addf %48, %50 : vector<32x128xf32>
    %cst_65 = arith.constant 0.000000e+00 : f32
    %52 = vector.broadcast %cst_65 : f32 to vector<32x128xf32>
    %53 = arith.maximumf %51, %52 : vector<32x128xf32>
    %54 = vector.shape_cast %53 : vector<32x128xf32> to vector<2x16x128xf32>
    %c0_66 = arith.constant 0 : index
    %c0_67 = arith.constant 0 : index
    %c0_68 = arith.constant 0 : index
    %55 = vector.load %arg5[%c0_66, %c0_67, %c0_68] : memref<2x16x128xf32, #tpu.memory_space<vmem>>, vector<2x16x128xf32>
    tpu.vector_store %arg5[%c0_66, %c0_67, %c0_68], %54 {strides = array<i32>} : memref<2x16x128xf32, #tpu.memory_space<vmem>>, vector<2x16x128xf32>,
    return
  }
  func.func @transform_0(%arg0: i32) -> (i32, i32, i32) {
    %c0_i32 = arith.constant 0 : i32
    %c0_i32_0 = arith.constant 0 : i32
    %c0_i32_1 = arith.constant 0 : i32
    return %arg0, %c0_i32, %c0_i32_0 : i32, i32, i32
  }
  func.func @transform_1(%arg0: i32) -> (i32, i32, i32) {
    %c0_i32 = arith.constant 0 : i32
    %c0_i32_0 = arith.constant 0 : i32
    %c0_i32_1 = arith.constant 0 : i32
    %c0_i32_2 = arith.constant 0 : i32
    return %c0_i32, %c0_i32_0, %c0_i32_1 : i32, i32, i32
  }
  func.func @transform_2(%arg0: i32) -> (i32, i32, i32) {
    %c0_i32 = arith.constant 0 : i32
    %c0_i32_0 = arith.constant 0 : i32
    %c0_i32_1 = arith.constant 0 : i32
    %c0_i32_2 = arith.constant 0 : i32
    return %c0_i32, %c0_i32_0, %c0_i32_1 : i32, i32, i32
  }
  func.func @transform_3(%arg0: i32) -> (i32, i32) {
    %c0_i32 = arith.constant 0 : i32
    %c0_i32_0 = arith.constant 0 : i32
    %c0_i32_1 = arith.constant 0 : i32
    return %c0_i32, %c0_i32_0 : i32, i32
  }
  func.func @transform_4(%arg0: i32) -> (i32, i32, i32) {
    %c0_i32 = arith.constant 0 : i32
    %c0_i32_0 = arith.constant 0 : i32
    %c0_i32_1 = arith.constant 0 : i32
    return %arg0, %c0_i32, %c0_i32_0 : i32, i32, i32
  }
}

</mosaic_0001>

<llo_original>
// kernel: decoder_block_forward.1
$region0: #{decoder_block_forward.1}
  #allocation0 [shape = 'u32[]', space=smem, size = 0x4, offset = 0x4, fixed_abs, tag = 'smem constant byte address 0x4 - core index']
  #allocation1 [shape = 'u32[144,128]{1,0:T(1,128)}', space=vmem, size = 0x12000, scoped, tag = 'internal scratch']
  #allocation2 [shape = 'f32[2,18,64]{2,1,0:T(8,128)}', space=vmem, size = 0x6000, scoped, tag = 'scratch operand']
  #allocation3 [shape = 'f32[2,18,128]{2,1,0:T(8,128)}', space=vmem, size = 0x6000, scoped, tag = 'scratch operand']
  %s0 = inlined_call_operand.vmem [shape: f32[2,16,64], index: 0, kind: input, shape index: {}]
  %s1 = inlined_call_operand.hbm [shape: f32[3,64,128], index: 1, kind: input, shape index: {}]
  %s2 = inlined_call_operand.vmem [shape: f32[3,128,128], index: 2, kind: input, shape index: {}]
  %s3 = inlined_call_operand.vmem [shape: f32[2,128], index: 3, kind: input, shape index: {}]
  %s4 = inlined_call_operand.vmem [shape: f32[2,16,128], index: 4, kind: output, shape index: {}]
  %s5 = sld [smem:[#allocation0]]
  $region30: #{decoder_block_forward.1} parent=0
    _
  %s7 = ssub.s32 1, %s5
  %s8 = scalar_select 0, %s7, %s5
  $region1: #{decoder_block_forward.1} parent=0
    #allocation4 [shape = 'u8[98304]{0}', space=vmem, size = 0x18000, scoped, tag = 'input window, operand 1, single buffered']
    #allocation5 [shape = 's32[1]{0}', space=sflag, size = 0x4, scoped, tag = 'scoped memory for decoder_block_forward.1']
    %9 = vsyncpa [#allocation5], 0
    // Predicated region
    $region2: #{decoder_block_forward.1} parent=1 // pred_check
      _
    $region3: #{decoder_block_forward.1} parent=1 // pred_check_branch
      %11 = sbr.rel (0) target = $region5
    $region4: #{decoder_block_forward.1} parent=1 // pred_region
      _
    $region5: #{decoder_block_forward.1} parent=1 // pred_fallthru
      _
    // Predicated region
    $region6: #{decoder_block_forward.1} parent=1 // pred_check
      _
    $region7: #{decoder_block_forward.1} parent=1 // pred_check_branch
      %13 = sbr.rel (0) target = $region9
    $region8: #{decoder_block_forward.1} parent=1 // pred_region
      %s15 = ssub.s32 3072, 3072
      %16 = vsyncadd [#allocation5], %s15
      %s17 = sshll.u32 [#allocation4], 4
      %s18 = int_to_ptr.vmem [resolvable:$true] %s17
      %23 = dma.hbm_to_vmem [thread:$0]  %s1, 3072, %s18, [#allocation5], 128, 128, 8
    $region9: #{decoder_block_forward.1} parent=1 // pred_fallthru
      _
    // Predicated region
    $region10: #{decoder_block_forward.1} parent=1 // pred_check
      _
    $region11: #{decoder_block_forward.1} parent=1 // pred_check_branch
      %25 = sbr.rel (0) target = $region13
    $region12: #{decoder_block_forward.1} parent=1 // pred_region
      _
    $region13: #{decoder_block_forward.1} parent=1 // pred_fallthru
      _
    // Predicated region
    $region14: #{decoder_block_forward.1} parent=1 // pred_check
      _
    $region15: #{decoder_block_forward.1} parent=1 // pred_check_branch
      %27 = sbr.rel (0) target = $region17
    $region16: #{decoder_block_forward.1} parent=1 // pred_region
      _
    $region17: #{decoder_block_forward.1} parent=1 // pred_fallthru
      _
    // Predicated region
    $region18: #{decoder_block_forward.1} parent=1 // pred_check
      _
    $region19: #{decoder_block_forward.1} parent=1 // pred_check_branch
      %29 = sbr.rel (0) target = $region21
    $region20: #{decoder_block_forward.1} parent=1 // pred_region
      %30 = dma.done [#allocation5], 3072
    $region21: #{decoder_block_forward.1} parent=1 // pred_fallthru
      _
    %vm31 = vcmask 516096
    %32 = vst.msk [vmem:[#allocation2] sm:$0x1] %vm31, 0.0
    %33 = vst.msk [vmem:[#allocation2 + $0x18] sm:$0x1] %vm31, 0.0
    %34 = vst.msk [vmem:[#allocation2 + $0x11] sm:$0x1] %vm31, 0.0
    %35 = vst.msk [vmem:[#allocation2 + $0x29] sm:$0x1] %vm31, 0.0
    %v36 = vld [vmem:[%s0] sm:$0xff]
    %v37 = vld [vmem:[%s0 + $0x8] sm:$0xff]
    %v38 = vld [vmem:[%s0 + $0x10] sm:$0xff]
    %v39 = vld [vmem:[%s0 + $0x18] sm:$0xff]
    %vm40 = vcmask 523264
    %41 = vst.msk [vmem:[#allocation2 + $0x1] sm:$0xff] %vm40, %v36
    %42 = vst.msk [vmem:[#allocation2 + $0x9] sm:$0xff] %vm40, %v37
    %43 = vst.msk [vmem:[#allocation2 + $0x19] sm:$0xff] %vm40, %v38
    %44 = vst.msk [vmem:[#allocation2 + $0x21] sm:$0xff] %vm40, %v39
    %v45 = vld [vmem:[#allocation2] sm:$0xff]
    %v46 = vld [vmem:[#allocation2 + $0x8] sm:$0xff]
    %v47 = vld [vmem:[#allocation2 + $0x18] sm:$0xff]
    %v48 = vld [vmem:[#allocation2 + $0x20] sm:$0xff]
    %v49 = vld [vmem:[#allocation4] sm:$0xff]
    %v50 = vld [vmem:[#allocation4 + $0x8] sm:$0xff]
    %v51 = vld [vmem:[#allocation4 + $0x10] sm:$0xff]
    %v52 = vld [vmem:[#allocation4 + $0x18] sm:$0xff]
    %v53 = vld [vmem:[#allocation4 + $0x20] sm:$0xff]
    %v54 = vld [vmem:[#allocation4 + $0x28] sm:$0xff]
    %v55 = vld [vmem:[#allocation4 + $0x30] sm:$0xff]
    %v56 = vld [vmem:[#allocation4 + $0x38] sm:$0xff]
    %v57 = vld [vmem:[#allocation2 + $0x1] sm:$0xff]
    %v58 = vld [vmem:[#allocation2 + $0x9] sm:$0xff]
    %v59 = vld [vmem:[#allocation2 + $0x19] sm:$0xff]
    %v60 = vld [vmem:[#allocation2 + $0x21] sm:$0xff]
    %s61 = scalar_lea.vmem [#allocation4], 64
    %v62 = vld [vmem:[%s61] sm:$0xff]
    %v63 = vld [vmem:[%s61 + $0x8] sm:$0xff]
    %v64 = vld [vmem:[%s61 + $0x10] sm:$0xff]
    %v65 = vld [vmem:[%s61 + $0x18] sm:$0xff]
    %v66 = vld [vmem:[%s61 + $0x20] sm:$0xff]
    %v67 = vld [vmem:[%s61 + $0x28] sm:$0xff]
    %v68 = vld [vmem:[%s61 + $0x30] sm:$0xff]
    %v69 = vld [vmem:[%s61 + $0x38] sm:$0xff]
    %v71 = vsel %vm40, %v57, 0
    %v74 = vsel %vm40, %v58, 0
    %v77 = vsel %vm40, %v59, 0
    %v80 = vsel %vm40, %v60, 0
    %82 = vmatprep.subr.mxu0 0.0
    %83 = vmatpush1.msra.mxu0 0.0
    %84 = vmatprep.subr.mxu0 0.0
    %85 = vmatpush1.msra.mxu0 0.0
    %86 = vmatprep.subr.mxu0 0.0
    %87 = vmatpush1.msra.mxu0 0.0
    %88 = vmatprep.subr.mxu0 0.0
    %89 = vmatpush1.msra.mxu0 0.0
    %90 = vmatprep.subr.mxu0 0.0
    %91 = vmatpush1.msra.mxu0 0.0
    %92 = vmatprep.subr.mxu0 0.0
    %93 = vmatpush1.msra.mxu0 0.0
    %94 = vmatprep.subr.mxu0 0.0
    %95 = vmatpush1.msra.mxu0 0.0
    %96 = vmatprep.subr.mxu0 0.0
    %97 = vmatpush1.msra.mxu0 0.0
    %98 = vmatprep.subr.mxu0 0.0
    %99 = vmatpush1.msra.mxu0 %v69
    %100 = vmatprep.subr.mxu0 0.0
    %101 = vmatpush1.msra.mxu0 %v68
    %102 = vmatprep.subr.mxu0 0.0
    %103 = vmatpush1.msra.mxu0 %v67
    %104 = vmatprep.subr.mxu0 0.0
    %105 = vmatpush1.msra.mxu0 %v66
    %106 = vmatprep.subr.mxu0 0.0
    %107 = vmatpush1.msra.mxu0 %v65
    %108 = vmatprep.subr.mxu0 0.0
    %109 = vmatpush1.msra.mxu0 %v64
    %110 = vmatprep.subr.mxu0 0.0
    %111 = vmatpush1.msra.mxu0 %v63
    %112 = vmatprep.subr.mxu0 0.0
    %113 = vmatpush1.msra.mxu0 %v62
    %114 = vmatprep.subr.mxu0 0.0
    %115 = vmatpush2.msra.mxu0 0.0
    %116 = vmatprep.subr.mxu0 0.0
    %117 = vmatpush2.msra.mxu0 0.0
    %118 = vmatprep.subr.mxu0 0.0
    %119 = vmatpush2.msra.mxu0 0.0
    %120 = vmatprep.subr.mxu0 0.0
    %121 = vmatpush2.msra.mxu0 0.0
    %122 = vmatprep.subr.mxu0 0.0
    %123 = vmatpush2.msra.mxu0 0.0
    %124 = vmatprep.subr.mxu0 0.0
    %125 = vmatpush2.msra.mxu0 0.0
    %126 = vmatprep.subr.mxu0 0.0
    %127 = vmatpush2.msra.mxu0 0.0
    %128 = vmatprep.subr.mxu0 0.0
    %129 = vmatpush2.msra.mxu0 0.0
    %130 = vmatprep.subr.mxu0 0.0
    %131 = vmatpush2.msra.mxu0 0.0
    %132 = vmatprep.subr.mxu0 0.0
    %133 = vmatpush2.msra.mxu0 0.0
    %134 = vmatprep.subr.mxu0 0.0
    %135 = vmatpush2.msra.mxu0 0.0
    %136 = vmatprep.subr.mxu0 0.0
    %137 = vmatpush2.msra.mxu0 0.0
    %138 = vmatprep.subr.mxu0 0.0
    %139 = vmatpush2.msra.mxu0 0.0
    %140 = vmatprep.subr.mxu0 0.0
    %141 = vmatpush2.msra.mxu0 0.0
    %142 = vmatprep.subr.mxu0 0.0
    %143 = vmatpush2.msra.mxu0 0.0
    %144 = vmatprep.subr.mxu0 0.0
    %145 = vmatpush2.msra.mxu0 0.0
    %146 = vmatprep.mubr.f32.mxu0 0.0
    %147 = vmatmul.mubr.f32.gmra.mxu0 %v71
    %v148 = vpop.f32.mrf.mxu0
    %v149 = vadd.f32 0.0, %v148
    %v150 = vpop.f32.mrf.mxu0
    %151 = vmatprep.mubr.f32.mxu0 0.0
    %152 = vmatmul.mubr.f32.gmra.mxu0 %v74
    %v153 = vpop.f32.mrf.mxu0
    %v154 = vadd.f32 0.0, %v153
    %v155 = vpop.f32.mrf.mxu0
    %156 = vmatprep.mubr.f32.mxu0 0.0
    %157 = vmatmul.mubr.f32.gmra.mxu0 %v77
    %v158 = vpop.f32.mrf.mxu0
    %v159 = vadd.f32 0.0, %v158
    %v160 = vpop.f32.mrf.mxu0
    %161 = vmatprep.mubr.f32.mxu0 0.0
    %162 = vmatmul.mubr.f32.gmra.mxu0 %v80
    %v163 = vpop.f32.mrf.mxu0
    %v164 = vadd.f32 0.0, %v163
    %v165 = vpop.f32.mrf.mxu0
    %166 = vdwg.mxu0
    %v168 = vsel %vm40, %v45, 0
    %v171 = vsel %vm40, %v46, 0
    %v174 = vsel %vm40, %v47, 0
    %v177 = vsel %vm40, %v48, 0
    %179 = vmatprep.subr.mxu0 0.0
    %180 = vmatpush1.msra.mxu0 0.0
    %181 = vmatprep.subr.mxu0 0.0
    %182 = vmatpush1.msra.mxu0 0.0
    %183 = vmatprep.subr.mxu0 0.0
    %184 = vmatpush1.msra.mxu0 0.0
    %185 = vmatprep.subr.mxu0 0.0
    %186 = vmatpush1.msra.mxu0 0.0
    %187 = vmatprep.subr.mxu0 0.0
    %188 = vmatpush1.msra.mxu0 0.0
    %189 = vmatprep.subr.mxu0 0.0
    %190 = vmatpush1.msra.mxu0 0.0
    %191 = vmatprep.subr.mxu0 0.0
    %192 = vmatpush1.msra.mxu0 0.0
    %193 = vmatprep.subr.mxu0 0.0
    %194 = vmatpush1.msra.mxu0 0.0
    %195 = vmatprep.subr.mxu0 0.0
    %196 = vmatpush1.msra.mxu0 %v56
    %197 = vmatprep.subr.mxu0 0.0
    %198 = vmatpush1.msra.mxu0 %v55
    %199 = vmatprep.subr.mxu0 0.0
    %200 = vmatpush1.msra.mxu0 %v54
    %201 = vmatprep.subr.mxu0 0.0
    %202 = vmatpush1.msra.mxu0 %v53
    %203 = vmatprep.subr.mxu0 0.0
    %204 = vmatpush1.msra.mxu0 %v52
    %205 = vmatprep.subr.mxu0 0.0
    %206 = vmatpush1.msra.mxu0 %v51
    %207 = vmatprep.subr.mxu0 0.0
    %208 = vmatpush1.msra.mxu0 %v50
    %209 = vmatprep.subr.mxu0 0.0
    %210 = vmatpush1.msra.mxu0 %v49
    %211 = vmatprep.subr.mxu0 0.0
    %212 = vmatpush2.msra.mxu0 0.0
    %213 = vmatprep.subr.mxu0 0.0
    %214 = vmatpush2.msra.mxu0 0.0
    %215 = vmatprep.subr.mxu0 0.0
    %216 = vmatpush2.msra.mxu0 0.0
    %217 = vmatprep.subr.mxu0 0.0
    %218 = vmatpush2.msra.mxu0 0.0
    %219 = vmatprep.subr.mxu0 0.0
    %220 = vmatpush2.msra.mxu0 0.0
    %221 = vmatprep.subr.mxu0 0.0
    %222 = vmatpush2.msra.mxu0 0.0
    %223 = vmatprep.subr.mxu0 0.0
    %224 = vmatpush2.msra.mxu0 0.0
    %225 = vmatprep.subr.mxu0 0.0
    %226 = vmatpush2.msra.mxu0 0.0
    %227 = vmatprep.subr.mxu0 0.0
    %228 = vmatpush2.msra.mxu0 0.0
    %229 = vmatprep.subr.mxu0 0.0
    %230 = vmatpush2.msra.mxu0 0.0
    %231 = vmatprep.subr.mxu0 0.0
    %232 = vmatpush2.msra.mxu0 0.0
    %233 = vmatprep.subr.mxu0 0.0
    %234 = vmatpush2.msra.mxu0 0.0
    %235 = vmatprep.subr.mxu0 0.0
    %236 = vmatpush2.msra.mxu0 0.0
    %237 = vmatprep.subr.mxu0 0.0
    %238 = vmatpush2.msra.mxu0 0.0
    %239 = vmatprep.subr.mxu0 0.0
    %240 = vmatpush2.msra.mxu0 0.0
    %241 = vmatprep.subr.mxu0 0.0
    %242 = vmatpush2.msra.mxu0 0.0
    %243 = vmatprep.mubr.f32.mxu0 0.0
    %244 = vmatmul.mubr.f32.gmra.mxu0 %v168
    %v245 = vpop.f32.mrf.mxu0
    %v246 = vadd.f32 %v149, %v245
    %v247 = vpop.f32.mrf.mxu0
    %248 = vmatprep.mubr.f32.mxu0 0.0
    %249 = vmatmul.mubr.f32.gmra.mxu0 %v171
    %v250 = vpop.f32.mrf.mxu0
    %v251 = vadd.f32 %v154, %v250
    %v252 = vpop.f32.mrf.mxu0
    %253 = vmatprep.mubr.f32.mxu0 0.0
    %254 = vmatmul.mubr.f32.gmra.mxu0 %v174
    %v255 = vpop.f32.mrf.mxu0
    %v256 = vadd.f32 %v159, %v255
    %v257 = vpop.f32.mrf.mxu0
    %258 = vmatprep.mubr.f32.mxu0 0.0
    %259 = vmatmul.mubr.f32.gmra.mxu0 %v177
    %v260 = vpop.f32.mrf.mxu0
    %v261 = vadd.f32 %v164, %v260
    %v262 = vpop.f32.mrf.mxu0
    %263 = vdwg.mxu0
    %v264 = vld [vmem:[#allocation2 + $0x2] sm:$0xff]
    %v265 = vld [vmem:[#allocation2 + $0xa] sm:$0xff]
    %v266 = vld [vmem:[#allocation2 + $0x1a] sm:$0xff]
    %v267 = vld [vmem:[#allocation2 + $0x22] sm:$0xff]
    %s268 = scalar_lea.vmem [#allocation4], 128
    %v269 = vld [vmem:[%s268] sm:$0xff]
    %v270 = vld [vmem:[%s268 + $0x8] sm:$0xff]
    %v271 = vld [vmem:[%s268 + $0x10] sm:$0xff]
    %v272 = vld [vmem:[%s268 + $0x18] sm:$0xff]
    %v273 = vld [vmem:[%s268 + $0x20] sm:$0xff]
    %v274 = vld [vmem:[%s268 + $0x28] sm:$0xff]
    %v275 = vld [vmem:[%s268 + $0x30] sm:$0xff]
    %v276 = vld [vmem:[%s268 + $0x38] sm:$0xff]
    %v278 = vsel %vm40, %v264, 0
    %v281 = vsel %vm40, %v265, 0
    %v284 = vsel %vm40, %v266, 0
    %v287 = vsel %vm40, %v267, 0
    %289 = vmatprep.subr.mxu0 0.0
    %290 = vmatpush1.msra.mxu0 0.0
    %291 = vmatprep.subr.mxu0 0.0
    %292 = vmatpush1.msra.mxu0 0.0
    %293 = vmatprep.subr.mxu0 0.0
    %294 = vmatpush1.msra.mxu0 0.0
    %295 = vmatprep.subr.mxu0 0.0
    %296 = vmatpush1.msra.mxu0 0.0
    %297 = vmatprep.subr.mxu0 0.0
    %298 = vmatpush1.msra.mxu0 0.0
    %299 = vmatprep.subr.mxu0 0.0
    %300 = vmatpush1.msra.mxu0 0.0
    %301 = vmatprep.subr.mxu0 0.0
    %302 = vmatpush1.msra.mxu0 0.0
    %303 = vmatprep.subr.mxu0 0.0
    %304 = vmatpush1.msra.mxu0 0.0
    %305 = vmatprep.subr.mxu0 0.0
    %306 = vmatpush1.msra.mxu0 %v276
    %307 = vmatprep.subr.mxu0 0.0
    %308 = vmatpush1.msra.mxu0 %v275
    %309 = vmatprep.subr.mxu0 0.0
    %310 = vmatpush1.msra.mxu0 %v274
    %311 = vmatprep.subr.mxu0 0.0
    %312 = vmatpush1.msra.mxu0 %v273
    %313 = vmatprep.subr.mxu0 0.0
    %314 = vmatpush1.msra.mxu0 %v272
    %315 = vmatprep.subr.mxu0 0.0
    %316 = vmatpush1.msra.mxu0 %v271
    %317 = vmatprep.subr.mxu0 0.0
    %318 = vmatpush1.msra.mxu0 %v270
    %319 = vmatprep.subr.mxu0 0.0
    %320 = vmatpush1.msra.mxu0 %v269
    %321 = vmatprep.subr.mxu0 0.0
    %322 = vmatpush2.msra.mxu0 0.0
    %323 = vmatprep.subr.mxu0 0.0
    %324 = vmatpush2.msra.mxu0 0.0
    %325 = vmatprep.subr.mxu0 0.0
    %326 = vmatpush2.msra.mxu0 0.0
    %327 = vmatprep.subr.mxu0 0.0
    %328 = vmatpush2.msra.mxu0 0.0
    %329 = vmatprep.subr.mxu0 0.0
    %330 = vmatpush2.msra.mxu0 0.0
    %331 = vmatprep.subr.mxu0 0.0
    %332 = vmatpush2.msra.mxu0 0.0
    %333 = vmatprep.subr.mxu0 0.0
    %334 = vmatpush2.msra.mxu0 0.0
    %335 = vmatprep.subr.mxu0 0.0
    %336 = vmatpush2.msra.mxu0 0.0
    %337 = vmatprep.subr.mxu0 0.0
    %338 = vmatpush2.msra.mxu0 0.0
    %339 = vmatprep.subr.mxu0 0.0
    %340 = vmatpush2.msra.mxu0 0.0
    %341 = vmatprep.subr.mxu0 0.0
    %342 = vmatpush2.msra.mxu0 0.0
    %343 = vmatprep.subr.mxu0 0.0
    %344 = vmatpush2.msra.mxu0 0.0
    %345 = vmatprep.subr.mxu0 0.0
    %346 = vmatpush2.msra.mxu0 0.0
    %347 = vmatprep.subr.mxu0 0.0
    %348 = vmatpush2.msra.mxu0 0.0
    %349 = vmatprep.subr.mxu0 0.0
    %350 = vmatpush2.msra.mxu0 0.0
    %351 = vmatprep.subr.mxu0 0.0
    %352 = vmatpush2.msra.mxu0 0.0
    %353 = vmatprep.mubr.f32.mxu0 0.0
    %354 = vmatmul.mubr.f32.gmra.mxu0 %v278
    %v355 = vpop.f32.mrf.mxu0
    %v356 = vadd.f32 0.0, %v355
    %v357 = vpop.f32.mrf.mxu0
    %358 = vmatprep.mubr.f32.mxu0 0.0
    %359 = vmatmul.mubr.f32.gmra.mxu0 %v281
    %v360 = vpop.f32.mrf.mxu0
    %v361 = vadd.f32 0.0, %v360
    %v362 = vpop.f32.mrf.mxu0
    %363 = vmatprep.mubr.f32.mxu0 0.0
    %364 = vmatmul.mubr.f32.gmra.mxu0 %v284
    %v365 = vpop.f32.mrf.mxu0
    %v366 = vadd.f32 0.0, %v365
    %v367 = vpop.f32.mrf.mxu0
    %368 = vmatprep.mubr.f32.mxu0 0.0
    %369 = vmatmul.mubr.f32.gmra.mxu0 %v287
    %v370 = vpop.f32.mrf.mxu0
    %v371 = vadd.f32 0.0, %v370
    %v372 = vpop.f32.mrf.mxu0
    %373 = vdwg.mxu0
    %v374 = vadd.f32 %v246, %v356
    %v375 = vadd.f32 %v251, %v361
    %v376 = vadd.f32 %v256, %v366
    %v377 = vadd.f32 %v261, %v371
    %v378 = vld [vmem:[%s3] sm:$0x1]
    %v379 = vlaneseq
    %v380 = vshrl.u32 %v379, 7
    %v381 = vsub.s32 0, %v380
    %v382 = vrot.slane %v378, %v381
    %v383 = vadd.f32 %v374, %v382
    %v384 = vadd.f32 %v375, %v382
    %v385 = vadd.f32 %v376, %v382
    %v386 = vadd.f32 %v377, %v382
    %v387 = vmax.f32 %v383, 0.0
    %v388 = vmax.f32 %v384, 0.0
    %v389 = vmax.f32 %v385, 0.0
    %v390 = vmax.f32 %v386, 0.0
    %391 = vst [vmem:[#allocation3] sm:$0x1] 0.0
    %392 = vst [vmem:[#allocation3 + $0x18] sm:$0x1] 0.0
    %393 = vst [vmem:[#allocation3 + $0x11] sm:$0x1] 0.0
    %394 = vst [vmem:[#allocation3 + $0x29] sm:$0x1] 0.0
    %395 = vst [vmem:[#allocation3 + $0x1] sm:$0xff] %v387
    %396 = vst [vmem:[#allocation3 + $0x9] sm:$0xff] %v388
    %397 = vst [vmem:[#allocation3 + $0x19] sm:$0xff] %v389
    %398 = vst [vmem:[#allocation3 + $0x21] sm:$0xff] %v390
    %v399 = vld [vmem:[#allocation3] sm:$0xff]
    %v400 = vld [vmem:[#allocation3 + $0x8] sm:$0xff]
    %v401 = vld [vmem:[#allocation3 + $0x18] sm:$0xff]
    %v402 = vld [vmem:[#allocation3 + $0x20] sm:$0xff]
    %v403 = vld [vmem:[%s2] sm:$0xff]
    %v404 = vld [vmem:[%s2 + $0x8] sm:$0xff]
    %v405 = vld [vmem:[%s2 + $0x10] sm:$0xff]
    %v406 = vld [vmem:[%s2 + $0x18] sm:$0xff]
    %v407 = vld [vmem:[%s2 + $0x20] sm:$0xff]
    %v408 = vld [vmem:[%s2 + $0x28] sm:$0xff]
    %v409 = vld [vmem:[%s2 + $0x30] sm:$0xff]
    %v410 = vld [vmem:[%s2 + $0x38] sm:$0xff]
    %v411 = vld [vmem:[%s2 + $0x40] sm:$0xff]
    %v412 = vld [vmem:[%s2 + $0x48] sm:$0xff]
    %v413 = vld [vmem:[%s2 + $0x50] sm:$0xff]
    %v414 = vld [vmem:[%s2 + $0x58] sm:$0xff]
    %v415 = vld [vmem:[%s2 + $0x60] sm:$0xff]
    %v416 = vld [vmem:[%s2 + $0x68] sm:$0xff]
    %v417 = vld [vmem:[%s2 + $0x70] sm:$0xff]
    %v418 = vld [vmem:[%s2 + $0x78] sm:$0xff]
    %v419 = vld [vmem:[#allocation3 + $0x1] sm:$0xff]
    %v420 = vld [vmem:[#allocation3 + $0x9] sm:$0xff]
    %v421 = vld [vmem:[#allocation3 + $0x19] sm:$0xff]
    %v422 = vld [vmem:[#allocation3 + $0x21] sm:$0xff]
    %s423 = scalar_lea.vmem %s2, 128
    %v424 = vld [vmem:[%s423] sm:$0xff]
    %v425 = vld [vmem:[%s423 + $0x8] sm:$0xff]
    %v426 = vld [vmem:[%s423 + $0x10] sm:$0xff]
    %v427 = vld [vmem:[%s423 + $0x18] sm:$0xff]
    %v428 = vld [vmem:[%s423 + $0x20] sm:$0xff]
    %v429 = vld [vmem:[%s423 + $0x28] sm:$0xff]
    %v430 = vld [vmem:[%s423 + $0x30] sm:$0xff]
    %v431 = vld [vmem:[%s423 + $0x38] sm:$0xff]
    %v432 = vld [vmem:[%s423 + $0x40] sm:$0xff]
    %v433 = vld [vmem:[%s423 + $0x48] sm:$0xff]
    %v434 = vld [vmem:[%s423 + $0x50] sm:$0xff]
    %v435 = vld [vmem:[%s423 + $0x58] sm:$0xff]
    %v436 = vld [vmem:[%s423 + $0x60] sm:$0xff]
    %v437 = vld [vmem:[%s423 + $0x68] sm:$0xff]
    %v438 = vld [vmem:[%s423 + $0x70] sm:$0xff]
    %v439 = vld [vmem:[%s423 + $0x78] sm:$0xff]
    %440 = vmatprep.subr.mxu0 0.0
    %441 = vmatpush1.msra.mxu0 %v439
    %442 = vmatprep.subr.mxu0 0.0
    %443 = vmatpush1.msra.mxu0 %v438
    %444 = vmatprep.subr.mxu0 0.0
    %445 = vmatpush1.msra.mxu0 %v437
    %446 = vmatprep.subr.mxu0 0.0
    %447 = vmatpush1.msra.mxu0 %v436
    %448 = vmatprep.subr.mxu0 0.0
    %449 = vmatpush1.msra.mxu0 %v435
    %450 = vmatprep.subr.mxu0 0.0
    %451 = vmatpush1.msra.mxu0 %v434
    %452 = vmatprep.subr.mxu0 0.0
    %453 = vmatpush1.msra.mxu0 %v433
    %454 = vmatprep.subr.mxu0 0.0
    %455 = vmatpush1.msra.mxu0 %v432
    %456 = vmatprep.subr.mxu0 0.0
    %457 = vmatpush1.msra.mxu0 %v431
    %458 = vmatprep.subr.mxu0 0.0
    %459 = vmatpush1.msra.mxu0 %v430
    %460 = vmatprep.subr.mxu0 0.0
    %461 = vmatpush1.msra.mxu0 %v429
    %462 = vmatprep.subr.mxu0 0.0
    %463 = vmatpush1.msra.mxu0 %v428
    %464 = vmatprep.subr.mxu0 0.0
    %465 = vmatpush1.msra.mxu0 %v427
    %466 = vmatprep.subr.mxu0 0.0
    %467 = vmatpush1.msra.mxu0 %v426
    %468 = vmatprep.subr.mxu0 0.0
    %469 = vmatpush1.msra.mxu0 %v425
    %470 = vmatprep.subr.mxu0 0.0
    %471 = vmatpush1.msra.mxu0 %v424
    %472 = vmatprep.subr.mxu0 0.0
    %473 = vmatpush2.msra.mxu0 0.0
    %474 = vmatprep.subr.mxu0 0.0
    %475 = vmatpush2.msra.mxu0 0.0
    %476 = vmatprep.subr.mxu0 0.0
    %477 = vmatpush2.msra.mxu0 0.0
    %478 = vmatprep.subr.mxu0 0.0
    %479 = vmatpush2.msra.mxu0 0.0
    %480 = vmatprep.subr.mxu0 0.0
    %481 = vmatpush2.msra.mxu0 0.0
    %482 = vmatprep.subr.mxu0 0.0
    %483 = vmatpush2.msra.mxu0 0.0
    %484 = vmatprep.subr.mxu0 0.0
    %485 = vmatpush2.msra.mxu0 0.0
    %486 = vmatprep.subr.mxu0 0.0
    %487 = vmatpush2.msra.mxu0 0.0
    %488 = vmatprep.subr.mxu0 0.0
    %489 = vmatpush2.msra.mxu0 0.0
    %490 = vmatprep.subr.mxu0 0.0
    %491 = vmatpush2.msra.mxu0 0.0
    %492 = vmatprep.subr.mxu0 0.0
    %493 = vmatpush2.msra.mxu0 0.0
    %494 = vmatprep.subr.mxu0 0.0
    %495 = vmatpush2.msra.mxu0 0.0
    %496 = vmatprep.subr.mxu0 0.0
    %497 = vmatpush2.msra.mxu0 0.0
    %498 = vmatprep.subr.mxu0 0.0
    %499 = vmatpush2.msra.mxu0 0.0
    %500 = vmatprep.subr.mxu0 0.0
    %501 = vmatpush2.msra.mxu0 0.0
    %502 = vmatprep.subr.mxu0 0.0
    %503 = vmatpush2.msra.mxu0 0.0
    %504 = vmatprep.mubr.f32.mxu0 0.0
    %505 = vmatmul.mubr.f32.gmra.mxu0 %v419
    %v506 = vpop.f32.mrf.mxu0
    %v507 = vadd.f32 0.0, %v506
    %v508 = vpop.f32.mrf.mxu0
    %509 = vmatprep.mubr.f32.mxu0 0.0
    %510 = vmatmul.mubr.f32.gmra.mxu0 %v420
    %v511 = vpop.f32.mrf.mxu0
    %v512 = vadd.f32 0.0, %v511
    %v513 = vpop.f32.mrf.mxu0
    %514 = vmatprep.mubr.f32.mxu0 0.0
    %515 = vmatmul.mubr.f32.gmra.mxu0 %v421
    %v516 = vpop.f32.mrf.mxu0
    %v517 = vadd.f32 0.0, %v516
    %v518 = vpop.f32.mrf.mxu0
    %519 = vmatprep.mubr.f32.mxu0 0.0
    %520 = vmatmul.mubr.f32.gmra.mxu0 %v422
    %v521 = vpop.f32.mrf.mxu0
    %v522 = vadd.f32 0.0, %v521
    %v523 = vpop.f32.mrf.mxu0
    %524 = vdwg.mxu0
    %525 = vmatprep.subr.mxu0 0.0
    %526 = vmatpush1.msra.mxu0 %v418
    %527 = vmatprep.subr.mxu0 0.0
    %528 = vmatpush1.msra.mxu0 %v417
    %529 = vmatprep.subr.mxu0 0.0
    %530 = vmatpush1.msra.mxu0 %v416
    %531 = vmatprep.subr.mxu0 0.0
    %532 = vmatpush1.msra.mxu0 %v415
    %533 = vmatprep.subr.mxu0 0.0
    %534 = vmatpush1.msra.mxu0 %v414
    %535 = vmatprep.subr.mxu0 0.0
    %536 = vmatpush1.msra.mxu0 %v413
    %537 = vmatprep.subr.mxu0 0.0
    %538 = vmatpush1.msra.mxu0 %v412
    %539 = vmatprep.subr.mxu0 0.0
    %540 = vmatpush1.msra.mxu0 %v411
    %541 = vmatprep.subr.mxu0 0.0
    %542 = vmatpush1.msra.mxu0 %v410
    %543 = vmatprep.subr.mxu0 0.0
    %544 = vmatpush1.msra.mxu0 %v409
    %545 = vmatprep.subr.mxu0 0.0
    %546 = vmatpush1.msra.mxu0 %v408
    %547 = vmatprep.subr.mxu0 0.0
    %548 = vmatpush1.msra.mxu0 %v407
    %549 = vmatprep.subr.mxu0 0.0
    %550 = vmatpush1.msra.mxu0 %v406
    %551 = vmatprep.subr.mxu0 0.0
    %552 = vmatpush1.msra.mxu0 %v405
    %553 = vmatprep.subr.mxu0 0.0
    %554 = vmatpush1.msra.mxu0 %v404
    %555 = vmatprep.subr.mxu0 0.0
    %556 = vmatpush1.msra.mxu0 %v403
    %557 = vmatprep.subr.mxu0 0.0
    %558 = vmatpush2.msra.mxu0 0.0
    %559 = vmatprep.subr.mxu0 0.0
    %560 = vmatpush2.msra.mxu0 0.0
    %561 = vmatprep.subr.mxu0 0.0
    %562 = vmatpush2.msra.mxu0 0.0
    %563 = vmatprep.subr.mxu0 0.0
    %564 = vmatpush2.msra.mxu0 0.0
    %565 = vmatprep.subr.mxu0 0.0
    %566 = vmatpush2.msra.mxu0 0.0
    %567 = vmatprep.subr.mxu0 0.0
    %568 = vmatpush2.msra.mxu0 0.0
    %569 = vmatprep.subr.mxu0 0.0
    %570 = vmatpush2.msra.mxu0 0.0
    %571 = vmatprep.subr.mxu0 0.0
    %572 = vmatpush2.msra.mxu0 0.0
    %573 = vmatprep.subr.mxu0 0.0
    %574 = vmatpush2.msra.mxu0 0.0
    %575 = vmatprep.subr.mxu0 0.0
    %576 = vmatpush2.msra.mxu0 0.0
    %577 = vmatprep.subr.mxu0 0.0
    %578 = vmatpush2.msra.mxu0 0.0
    %579 = vmatprep.subr.mxu0 0.0
    %580 = vmatpush2.msra.mxu0 0.0
    %581 = vmatprep.subr.mxu0 0.0
    %582 = vmatpush2.msra.mxu0 0.0
    %583 = vmatprep.subr.mxu0 0.0
    %584 = vmatpush2.msra.mxu0 0.0
    %585 = vmatprep.subr.mxu0 0.0
    %586 = vmatpush2.msra.mxu0 0.0
    %587 = vmatprep.subr.mxu0 0.0
    %588 = vmatpush2.msra.mxu0 0.0
    %589 = vmatprep.mubr.f32.mxu0 0.0
    %590 = vmatmul.mubr.f32.gmra.mxu0 %v399
    %v591 = vpop.f32.mrf.mxu0
    %v592 = vadd.f32 %v507, %v591
    %v593 = vpop.f32.mrf.mxu0
    %594 = vmatprep.mubr.f32.mxu0 0.0
    %595 = vmatmul.mubr.f32.gmra.mxu0 %v400
    %v596 = vpop.f32.mrf.mxu0
    %v597 = vadd.f32 %v512, %v596
    %v598 = vpop.f32.mrf.mxu0
    %599 = vmatprep.mubr.f32.mxu0 0.0
    %600 = vmatmul.mubr.f32.gmra.mxu0 %v401
    %v601 = vpop.f32.mrf.mxu0
    %v602 = vadd.f32 %v517, %v601
    %v603 = vpop.f32.mrf.mxu0
    %604 = vmatprep.mubr.f32.mxu0 0.0
    %605 = vmatmul.mubr.f32.gmra.mxu0 %v402
    %v606 = vpop.f32.mrf.mxu0
    %v607 = vadd.f32 %v522, %v606
    %v608 = vpop.f32.mrf.mxu0
    %609 = vdwg.mxu0
    %v610 = vld [vmem:[#allocation3 + $0x2] sm:$0xff]
    %v611 = vld [vmem:[#allocation3 + $0xa] sm:$0xff]
    %v612 = vld [vmem:[#allocation3 + $0x1a] sm:$0xff]
    %v613 = vld [vmem:[#allocation3 + $0x22] sm:$0xff]
    %s614 = scalar_lea.vmem %s2, 256
    %v615 = vld [vmem:[%s614] sm:$0xff]
    %v616 = vld [vmem:[%s614 + $0x8] sm:$0xff]
    %v617 = vld [vmem:[%s614 + $0x10] sm:$0xff]
    %v618 = vld [vmem:[%s614 + $0x18] sm:$0xff]
    %v619 = vld [vmem:[%s614 + $0x20] sm:$0xff]
    %v620 = vld [vmem:[%s614 + $0x28] sm:$0xff]
    %v621 = vld [vmem:[%s614 + $0x30] sm:$0xff]
    %v622 = vld [vmem:[%s614 + $0x38] sm:$0xff]
    %v623 = vld [vmem:[%s614 + $0x40] sm:$0xff]
    %v624 = vld [vmem:[%s614 + $0x48] sm:$0xff]
    %v625 = vld [vmem:[%s614 + $0x50] sm:$0xff]
    %v626 = vld [vmem:[%s614 + $0x58] sm:$0xff]
    %v627 = vld [vmem:[%s614 + $0x60] sm:$0xff]
    %v628 = vld [vmem:[%s614 + $0x68] sm:$0xff]
    %v629 = vld [vmem:[%s614 + $0x70] sm:$0xff]
    %v630 = vld [vmem:[%s614 + $0x78] sm:$0xff]
    %631 = vmatprep.subr.mxu0 0.0
    %632 = vmatpush1.msra.mxu0 %v630
    %633 = vmatprep.subr.mxu0 0.0
    %634 = vmatpush1.msra.mxu0 %v629
    %635 = vmatprep.subr.mxu0 0.0
    %636 = vmatpush1.msra.mxu0 %v628
    %637 = vmatprep.subr.mxu0 0.0
    %638 = vmatpush1.msra.mxu0 %v627
    %639 = vmatprep.subr.mxu0 0.0
    %640 = vmatpush1.msra.mxu0 %v626
    %641 = vmatprep.subr.mxu0 0.0
    %642 = vmatpush1.msra.mxu0 %v625
    %643 = vmatprep.subr.mxu0 0.0
    %644 = vmatpush1.msra.mxu0 %v624
    %645 = vmatprep.subr.mxu0 0.0
    %646 = vmatpush1.msra.mxu0 %v623
    %647 = vmatprep.subr.mxu0 0.0
    %648 = vmatpush1.msra.mxu0 %v622
    %649 = vmatprep.subr.mxu0 0.0
    %650 = vmatpush1.msra.mxu0 %v621
    %651 = vmatprep.subr.mxu0 0.0
    %652 = vmatpush1.msra.mxu0 %v620
    %653 = vmatprep.subr.mxu0 0.0
    %654 = vmatpush1.msra.mxu0 %v619
    %655 = vmatprep.subr.mxu0 0.0
    %656 = vmatpush1.msra.mxu0 %v618
    %657 = vmatprep.subr.mxu0 0.0
    %658 = vmatpush1.msra.mxu0 %v617
    %659 = vmatprep.subr.mxu0 0.0
    %660 = vmatpush1.msra.mxu0 %v616
    %661 = vmatprep.subr.mxu0 0.0
    %662 = vmatpush1.msra.mxu0 %v615
    %663 = vmatprep.subr.mxu0 0.0
    %664 = vmatpush2.msra.mxu0 0.0
    %665 = vmatprep.subr.mxu0 0.0
    %666 = vmatpush2.msra.mxu0 0.0
    %667 = vmatprep.subr.mxu0 0.0
    %668 = vmatpush2.msra.mxu0 0.0
    %669 = vmatprep.subr.mxu0 0.0
    %670 = vmatpush2.msra.mxu0 0.0
    %671 = vmatprep.subr.mxu0 0.0
    %672 = vmatpush2.msra.mxu0 0.0
    %673 = vmatprep.subr.mxu0 0.0
    %674 = vmatpush2.msra.mxu0 0.0
    %675 = vmatprep.subr.mxu0 0.0
    %676 = vmatpush2.msra.mxu0 0.0
    %677 = vmatprep.subr.mxu0 0.0
    %678 = vmatpush2.msra.mxu0 0.0
    %679 = vmatprep.subr.mxu0 0.0
    %680 = vmatpush2.msra.mxu0 0.0
    %681 = vmatprep.subr.mxu0 0.0
    %682 = vmatpush2.msra.mxu0 0.0
    %683 = vmatprep.subr.mxu0 0.0
    %684 = vmatpush2.msra.mxu0 0.0
    %685 = vmatprep.subr.mxu0 0.0
    %686 = vmatpush2.msra.mxu0 0.0
    %687 = vmatprep.subr.mxu0 0.0
    %688 = vmatpush2.msra.mxu0 0.0
    %689 = vmatprep.subr.mxu0 0.0
    %690 = vmatpush2.msra.mxu0 0.0
    %691 = vmatprep.subr.mxu0 0.0
    %692 = vmatpush2.msra.mxu0 0.0
    %693 = vmatprep.subr.mxu0 0.0
    %694 = vmatpush2.msra.mxu0 0.0
    %695 = vmatprep.mubr.f32.mxu0 0.0
    %696 = vmatmul.mubr.f32.gmra.mxu0 %v610
    %v697 = vpop.f32.mrf.mxu0
    %v698 = vadd.f32 0.0, %v697
    %v699 = vpop.f32.mrf.mxu0
    %700 = vmatprep.mubr.f32.mxu0 0.0
    %701 = vmatmul.mubr.f32.gmra.mxu0 %v611
    %v702 = vpop.f32.mrf.mxu0
    %v703 = vadd.f32 0.0, %v702
    %v704 = vpop.f32.mrf.mxu0
    %705 = vmatprep.mubr.f32.mxu0 0.0
    %706 = vmatmul.mubr.f32.gmra.mxu0 %v612
    %v707 = vpop.f32.mrf.mxu0
    %v708 = vadd.f32 0.0, %v707
    %v709 = vpop.f32.mrf.mxu0
    %710 = vmatprep.mubr.f32.mxu0 0.0
    %711 = vmatmul.mubr.f32.gmra.mxu0 %v613
    %v712 = vpop.f32.mrf.mxu0
    %v713 = vadd.f32 0.0, %v712
    %v714 = vpop.f32.mrf.mxu0
    %715 = vdwg.mxu0
    %v716 = vadd.f32 %v592, %v698
    %v717 = vadd.f32 %v597, %v703
    %v718 = vadd.f32 %v602, %v708
    %v719 = vadd.f32 %v607, %v713
    %v720 = vld [vmem:[%s3 + $0x1] sm:$0x1]
    %v721 = vlaneseq
    %v722 = vshrl.u32 %v721, 7
    %v723 = vsub.s32 0, %v722
    %v724 = vrot.slane %v720, %v723
    %v725 = vadd.f32 %v716, %v724
    %v726 = vadd.f32 %v717, %v724
    %v727 = vadd.f32 %v718, %v724
    %v728 = vadd.f32 %v719, %v724
    %v729 = vmax.f32 %v725, 0.0
    %v730 = vmax.f32 %v726, 0.0
    %v731 = vmax.f32 %v727, 0.0
    %v732 = vmax.f32 %v728, 0.0
    %733 = vst [vmem:[%s4] sm:$0xff] %v729
    %734 = vst [vmem:[%s4 + $0x8] sm:$0xff] %v730
    %735 = vst [vmem:[%s4 + $0x10] sm:$0xff] %v731
    %736 = vst [vmem:[%s4 + $0x18] sm:$0xff] %v732
    // Predicated region
    $region22: #{decoder_block_forward.1} parent=1 // pred_check
      _
    $region23: #{decoder_block_forward.1} parent=1 // pred_check_branch
      %738 = sbr.rel (0) target = $region25
    $region24: #{decoder_block_forward.1} parent=1 // pred_region
      _
    $region25: #{decoder_block_forward.1} parent=1 // pred_fallthru
      _
    // Predicated region
    $region26: #{decoder_block_forward.1} parent=1 // pred_check
      _
    $region27: #{decoder_block_forward.1} parent=1 // pred_check_branch
      %740 = sbr.rel (0) target = $region29
    $region28: #{decoder_block_forward.1} parent=1 // pred_region
      _
    $region29: #{decoder_block_forward.1} parent=1 // pred_fallthru
      _
    %741 = vsyncpa [#allocation5], 1

</llo_original>
